<compile_context>
chip_gen: v5e
topology: v5e:2x2
jax: 0.10.0
libtpu: 0.0.40
codegen_flags: <defaults>
</compile_context>

<pallas_src>
import functools

import jax
import jax.numpy as jnp
from jax.experimental import pallas as pl
from jax.experimental.pallas import tpu as pltpu

NN_LAYER_1 = 400
NN_LAYER_2 = 300

_LANE = 128
_SUBLANE = 8


def _round_up(n, m):
    return (n + m - 1) // m * m


N1_PAD = _round_up(NN_LAYER_1, _LANE)   # 512
N2_PAD = _round_up(NN_LAYER_2, _LANE)   # 384


def _policy_kernel(x_ref, w1_ref, w2_ref, w3_ref, b_ref, o_ref, *,
                   action_scale, n2, n3):
    # x tile: [tm, state_dim] f32; weights full (padded, bf16); biases stacked f32.
    x = x_ref[...].astype(jnp.bfloat16)
    b_all = b_ref[...]                       # [3, N1_PAD] f32
    b1 = b_all[0:1, :]                       # [1, N1_PAD]
    b2 = b_all[1:2, :n2]                     # [1, N2_PAD]
    b3 = b_all[2:3, :n3]                     # [1, N3_PAD]

    # fc1 + ReLU (f32 accumulate on the MXU, ReLU on the VPU)
    h1 = jnp.dot(x, w1_ref[...], preferred_element_type=jnp.float32) + b1
    h1 = jnp.maximum(h1, 0.0).astype(jnp.bfloat16)

    # fc2 + ReLU
    h2 = jnp.dot(h1, w2_ref[...], preferred_element_type=jnp.float32) + b2
    h2 = jnp.maximum(h2, 0.0).astype(jnp.bfloat16)

    # fc_mu + tanh * scale (tanh goes to the EUP -> essentially free slot)
    mu = jnp.dot(h2, w3_ref[...], preferred_element_type=jnp.float32) + b3
    o_ref[...] = (jnp.tanh(mu) * action_scale).astype(o_ref.dtype)


def init_params(key, state_dim, act_dim):
    """PyTorch-style default Linear init (uniform +/- 1/sqrt(fan_in)),
    weights stored [in, out], biases [out], all f32 (reference layout)."""
    def linear(k, fan_in, fan_out):
        kw, kb = jax.random.split(k)
        bound = 1.0 / jnp.sqrt(jnp.float32(fan_in))
        w = jax.random.uniform(kw, (fan_in, fan_out), jnp.float32, -bound, bound)
        b = jax.random.uniform(kb, (fan_out,), jnp.float32, -bound, bound)
        return w, b

    k1, k2, k3 = jax.random.split(key, 3)
    w1, b1 = linear(k1, state_dim, NN_LAYER_1)
    w2, b2 = linear(k2, NN_LAYER_1, NN_LAYER_2)
    w3, b3 = linear(k3, NN_LAYER_2, act_dim)
    return (w1, b1, w2, b2, w3, b3)


def prepare_params(params):
    """Pad feature dims to lane multiples, cast weights to bf16 (biases f32),
    and stack the three biases into one [3, N1_PAD] array. Done once per
    weight set; zero padding keeps ReLU/tanh of padded columns inert."""
    w1, b1, w2, b2, w3, b3 = params
    state_dim = w1.shape[0]
    act_dim = w3.shape[1]
    n3 = _round_up(max(act_dim, _LANE), _LANE)

    w1p = jnp.zeros((state_dim, N1_PAD), jnp.bfloat16)
    w1p = w1p.at[:, :NN_LAYER_1].set(w1.astype(jnp.bfloat16))
    w2p = jnp.zeros((N1_PAD, N2_PAD), jnp.bfloat16)
    w2p = w2p.at[:NN_LAYER_1, :NN_LAYER_2].set(w2.astype(jnp.bfloat16))
    w3p = jnp.zeros((N2_PAD, n3), jnp.bfloat16)
    w3p = w3p.at[:NN_LAYER_2, :act_dim].set(w3.astype(jnp.bfloat16))

    b_all = jnp.zeros((3, N1_PAD), jnp.float32)
    b_all = b_all.at[0, :NN_LAYER_1].set(b1)
    b_all = b_all.at[1, :NN_LAYER_2].set(b2)
    b_all = b_all.at[2, :act_dim].set(b3)

    return (w1p, w2p, w3p, b_all), act_dim


def double_policy_net(x, padded_params, action_scale, act_dim):
    """Forward pass of DoublePolicyNet as a fused Pallas TPU kernel."""
    w1p, w2p, w3p, b_all = padded_params
    B, state_dim = x.shape
    n1 = w1p.shape[1]
    n2 = w2p.shape[1]
    n3 = w3p.shape[1]

    # Sublane-aligned row tile (<= 512 rows keeps x/out double buffers ~0.6 MiB
    # while amortizing the per-grid-step overhead); grid over the batch.
    tm = min(_round_up(B, _SUBLANE), 512)
    b_pad = _round_up(B, tm)
    if b_pad != B:
        x = jnp.pad(x, ((0, b_pad - B), (0, 0)))
    grid = (b_pad // tm,)

    kernel = functools.partial(
        _policy_kernel, action_scale=float(action_scale), n2=n2, n3=n3)

    flops = 2 * B * (state_dim * NN_LAYER_1
                     + NN_LAYER_1 * NN_LAYER_2
                     + NN_LAYER_2 * act_dim)
    bytes_accessed = (sum(int(a.size) * a.dtype.itemsize
                          for a in (x, w1p, w2p, w3p, b_all))
                      + b_pad * n3 * 4)
    cost = pl.CostEstimate(flops=flops,
                           transcendentals=B * act_dim,
                           bytes_accessed=bytes_accessed)

    out = pl.pallas_call(
        kernel,
        out_shape=jax.ShapeDtypeStruct((b_pad, n3), jnp.float32),
        grid=grid,
        in_specs=[
            pl.BlockSpec((tm, state_dim), lambda i: (i, 0)),   # x: tiled rows
            pl.BlockSpec((state_dim, n1), lambda i: (0, 0)),   # w1: resident
            pl.BlockSpec((n1, n2), lambda i: (0, 0)),          # w2: resident
            pl.BlockSpec((n2, n3), lambda i: (0, 0)),          # w3: resident
            pl.BlockSpec((3, n1), lambda i: (0, 0)),           # stacked biases
        ],
        out_specs=pl.BlockSpec((tm, n3), lambda i: (i, 0)),
        compiler_params=pltpu.CompilerParams(
            dimension_semantics=("parallel",),
            vmem_limit_bytes=8 << 20,   # ~1-2 MiB real footprint; headroom kept
        ),
        cost_estimate=cost,
    )(x, w1p, w2p, w3p, b_all)

    return out[:B, :act_dim]


if __name__ == "__main__":
    key = jax.random.PRNGKey(0)
    k_params, k_x = jax.random.split(key)

    batch = 2
    state_dim = 8
    act_dim = 4
    action_scale = 2.0

    params = init_params(k_params, state_dim, act_dim)
    padded_params, _ = prepare_params(params)
    x = jax.random.normal(k_x, (batch, state_dim), jnp.float32)

    mu = double_policy_net(x, padded_params, action_scale, act_dim)
    jax.block_until_ready(mu)

    # Reference in plain JAX / f32 (same math as the PyTorch forward).
    w1, b1, w2, b2, w3, b3 = params
    h1 = jnp.maximum(x @ w1 + b1, 0.0)
    h2 = jnp.maximum(h1 @ w2 + b2, 0.0)
    ref = jnp.tanh(h2 @ w3 + b3) * action_scale

    assert mu.shape == (batch, act_dim)
    # bf16 weights => relaxed tolerance vs. the f32 reference.
    assert jnp.allclose(mu, ref, atol=5e-2, rtol=5e-2), (
        f"max abs diff {jnp.max(jnp.abs(mu - ref))}")
    print("KERNEL_OK")
</pallas_src>

<mosaic_0001>
module attributes {stable_mosaic.version = 11 : i64} {
  func.func @_policy_kernel(%arg0: i32, %arg1: memref<8x8xf32, #tpu.memory_space<vmem>>, %arg2: memref<8x512xbf16, #tpu.memory_space<vmem>>, %arg3: memref<512x384xbf16, #tpu.memory_space<vmem>>, %arg4: memref<384x128xbf16, #tpu.memory_space<vmem>>, %arg5: memref<3x512xf32, #tpu.memory_space<vmem>>, %arg6: memref<8x128xf32, #tpu.memory_space<vmem>>) attributes {dimension_semantics = [#tpu.dimension_semantics<parallel>], iteration_bounds = array<i64: 1>, scalar_prefetch = 0 : i64, scratch_operands = 0 : i64, tpu.core_type = #tpu.core_type<tc>, window_params = [{transform_indices = @transform_0, window_bounds = array<i64: 8, 8>}, {pipeline_mode = #tpu.pipeline_mode<synchronous>, transform_indices = @transform_1, window_bounds = array<i64: 8, 512>}, {pipeline_mode = #tpu.pipeline_mode<synchronous>, transform_indices = @transform_2, window_bounds = array<i64: 512, 384>}, {pipeline_mode = #tpu.pipeline_mode<synchronous>, transform_indices = @transform_3, window_bounds = array<i64: 384, 128>}, {pipeline_mode = #tpu.pipeline_mode<synchronous>, transform_indices = @transform_4, window_bounds = array<i64: 3, 512>}, {transform_indices = @transform_5, window_bounds = array<i64: 8, 128>}]} {
    %c0 = arith.constant 0 : index
    %c0_0 = arith.constant 0 : index
    %0 = vector.load %arg1[%c0, %c0_0] : memref<8x8xf32, #tpu.memory_space<vmem>>, vector<8x8xf32>
    %1 = arith.truncf %0 : vector<8x8xf32> to vector<8x8xbf16>
    %c0_1 = arith.constant 0 : index
    %c0_2 = arith.constant 0 : index
    %2 = vector.load %arg5[%c0_1, %c0_2] : memref<3x512xf32, #tpu.memory_space<vmem>>, vector<3x512xf32>
    %3 = vector.extract_strided_slice %2 {offsets = [0, 0], sizes = [1, 512], strides = [1, 1]} : vector<3x512xf32> to vector<1x512xf32>
    %4 = vector.extract_strided_slice %2 {offsets = [1, 0], sizes = [1, 384], strides = [1, 1]} : vector<3x512xf32> to vector<1x384xf32>
    %5 = vector.extract_strided_slice %2 {offsets = [2, 0], sizes = [1, 128], strides = [1, 1]} : vector<3x512xf32> to vector<1x128xf32>
    %c0_3 = arith.constant 0 : index
    %c0_4 = arith.constant 0 : index
    %6 = vector.load %arg2[%c0_3, %c0_4] : memref<8x512xbf16, #tpu.memory_space<vmem>>, vector<8x512xbf16>
    %cst = arith.constant dense<0.000000e+00> : vector<8x512xf32>
    %7 = tpu.matmul %1, %6, %cst {dimension_numbers = #tpu.dot_dimension_numbers<[1], [0], [0], [1], [0, 0, 1, 1], [], []>} : vector<8x8xbf16>, vector<8x512xbf16>, vector<8x512xf32> -> vector<8x512xf32>
    %8 = vector.broadcast %3 : vector<1x512xf32> to vector<8x512xf32>
    %9 = arith.addf %7, %8 : vector<8x512xf32>
    %cst_5 = arith.constant 0.000000e+00 : f32
    %10 = vector.broadcast %cst_5 : f32 to vector<8x512xf32>
    %11 = arith.maximumf %9, %10 : vector<8x512xf32>
    %12 = arith.truncf %11 : vector<8x512xf32> to vector<8x512xbf16>
    %c0_6 = arith.constant 0 : index
    %c0_7 = arith.constant 0 : index
    %13 = vector.load %arg3[%c0_6, %c0_7] : memref<512x384xbf16, #tpu.memory_space<vmem>>, vector<512x384xbf16>
    %cst_8 = arith.constant dense<0.000000e+00> : vector<8x384xf32>
    %14 = tpu.matmul %12, %13, %cst_8 {dimension_numbers = #tpu.dot_dimension_numbers<[1], [0], [0], [1], [0, 0, 1, 1], [], []>} : vector<8x512xbf16>, vector<512x384xbf16>, vector<8x384xf32> -> vector<8x384xf32>
    %15 = vector.broadcast %4 : vector<1x384xf32> to vector<8x384xf32>
    %16 = arith.addf %14, %15 : vector<8x384xf32>
    %cst_9 = arith.constant 0.000000e+00 : f32
    %17 = vector.broadcast %cst_9 : f32 to vector<8x384xf32>
    %18 = arith.maximumf %16, %17 : vector<8x384xf32>
    %19 = arith.truncf %18 : vector<8x384xf32> to vector<8x384xbf16>
    %c0_10 = arith.constant 0 : index
    %c0_11 = arith.constant 0 : index
    %20 = vector.load %arg4[%c0_10, %c0_11] : memref<384x128xbf16, #tpu.memory_space<vmem>>, vector<384x128xbf16>
    %cst_12 = arith.constant dense<0.000000e+00> : vector<8x128xf32>
    %21 = tpu.matmul %19, %20, %cst_12 {dimension_numbers = #tpu.dot_dimension_numbers<[1], [0], [0], [1], [0, 0, 1, 1], [], []>} : vector<8x384xbf16>, vector<384x128xbf16>, vector<8x128xf32> -> vector<8x128xf32>
    %22 = vector.broadcast %5 : vector<1x128xf32> to vector<8x128xf32>
    %23 = arith.addf %21, %22 : vector<8x128xf32>
    %24 = math.tanh %23 : vector<8x128xf32>
    %cst_13 = arith.constant 2.000000e+00 : f32
    %25 = vector.broadcast %cst_13 : f32 to vector<8x128xf32>
    %26 = arith.mulf %24, %25 : vector<8x128xf32>
    %c0_14 = arith.constant 0 : index
    %c0_15 = arith.constant 0 : index
    %27 = vector.load %arg6[%c0_14, %c0_15] : memref<8x128xf32, #tpu.memory_space<vmem>>, vector<8x128xf32>
    tpu.vector_store %arg6[%c0_14, %c0_15], %26 {strides = array<i32>} : memref<8x128xf32, #tpu.memory_space<vmem>>, vector<8x128xf32>,
    return
  }
  func.func @transform_0(%arg0: i32) -> (i32, i32) {
    %c0_i32 = arith.constant 0 : i32
    %c0_i32_0 = arith.constant 0 : i32
    return %arg0, %c0_i32 : i32, i32
  }
  func.func @transform_1(%arg0: i32) -> (i32, i32) {
    %c0_i32 = arith.constant 0 : i32
    %c0_i32_0 = arith.constant 0 : i32
    %c0_i32_1 = arith.constant 0 : i32
    return %c0_i32, %c0_i32_0 : i32, i32
  }
  func.func @transform_2(%arg0: i32) -> (i32, i32) {
    %c0_i32 = arith.constant 0 : i32
    %c0_i32_0 = arith.constant 0 : i32
    %c0_i32_1 = arith.constant 0 : i32
    return %c0_i32, %c0_i32_0 : i32, i32
  }
  func.func @transform_3(%arg0: i32) -> (i32, i32) {
    %c0_i32 = arith.constant 0 : i32
    %c0_i32_0 = arith.constant 0 : i32
    %c0_i32_1 = arith.constant 0 : i32
    return %c0_i32, %c0_i32_0 : i32, i32
  }
  func.func @transform_4(%arg0: i32) -> (i32, i32) {
    %c0_i32 = arith.constant 0 : i32
    %c0_i32_0 = arith.constant 0 : i32
    %c0_i32_1 = arith.constant 0 : i32
    return %c0_i32, %c0_i32_0 : i32, i32
  }
  func.func @transform_5(%arg0: i32) -> (i32, i32) {
    %c0_i32 = arith.constant 0 : i32
    %c0_i32_0 = arith.constant 0 : i32
    return %arg0, %c0_i32 : i32, i32
  }
}

</mosaic_0001>

<llo_original>
// kernel: tpu_custom_call.1
$region0: #{tpu_custom_call.1}
  #allocation0 [shape = 'u32[]', space=smem, size = 0x4, offset = 0x4, fixed_abs, tag = 'smem constant byte address 0x4 - core index']
  #allocation1 [shape = 'u32[72,128]{1,0:T(1,128)}', space=vmem, size = 0x9000, scoped, tag = 'internal scratch']
  %s0 = inlined_call_operand.hbm [shape: f32[8,8], index: 0, kind: input, shape index: {}]
  %s1 = inlined_call_operand.hbm [shape: bf16[8,512], index: 1, kind: input, shape index: {}]
  %s2 = inlined_call_operand.hbm [shape: bf16[512,384], index: 2, kind: input, shape index: {}]
  %s3 = inlined_call_operand.hbm [shape: bf16[384,128], index: 3, kind: input, shape index: {}]
  %s4 = inlined_call_operand.hbm [shape: f32[3,512], index: 4, kind: input, shape index: {}]
  %s5 = inlined_call_operand.hbm [shape: f32[8,128], index: 5, kind: output, shape index: {}]
  %s6 = sld [smem:[#allocation0]]
  $region50: #{tpu_custom_call.1} parent=0
    _
  %s8 = ssub.s32 1, %s6
  %s9 = scalar_select 0, %s8, %s6
  $region1: #{tpu_custom_call.1} parent=0
    #allocation2 [shape = 'u8[4096]{0}', space=vmem, size = 0x1000, scoped, tag = 'input window, operand 0, single buffered']
    #allocation3 [shape = 's32[1]{0}', space=sflag, size = 0x4, scoped, tag = 'scoped memory for tpu_custom_call.1']
    #allocation4 [shape = 's32[1]{0}', space=sflag, size = 0x4, scoped, tag = 'scoped memory for tpu_custom_call.1']
    #allocation5 [shape = 'u8[8192]{0}', space=vmem, size = 0x2000, scoped, tag = 'input window, operand 1, single buffered']
    #allocation6 [shape = 's32[1]{0}', space=sflag, size = 0x4, scoped, tag = 'scoped memory for tpu_custom_call.1']
    #allocation7 [shape = 'u8[393216]{0}', space=vmem, size = 0x60000, scoped, tag = 'input window, operand 2, single buffered']
    #allocation8 [shape = 'u8[98304]{0}', space=vmem, size = 0x18000, scoped, tag = 'input window, operand 3, single buffered']
    #allocation9 [shape = 's32[1]{0}', space=sflag, size = 0x4, scoped, tag = 'scoped memory for tpu_custom_call.1']
    #allocation10 [shape = 'u8[8192]{0}', space=vmem, size = 0x2000, scoped, tag = 'input window, operand 4, single buffered']
    #allocation11 [shape = 'u8[4096]{0}', space=vmem, size = 0x1000, scoped, tag = 'output window, operand 0, single buffered']
    %10 = vsyncpa [#allocation3], 0
    %11 = vsyncpa [#allocation6], 0
    %12 = vsyncpa [#allocation9], 0
    %13 = vsyncpa [#allocation4], 0
    // Predicated region
    $region2: #{tpu_custom_call.1} parent=1 // pred_check
      _
    $region3: #{tpu_custom_call.1} parent=1 // pred_check_branch
      %15 = sbr.rel (0) target = $region5
    $region4: #{tpu_custom_call.1} parent=1 // pred_region
      %17 = vsyncadd [#allocation3], 0
      %s19 = sshll.u32 %s0, 4
      %s20 = int_to_ptr.hbm [resolvable:$true] %s19
      %s21 = sshll.u32 [#allocation2], 4
      %s22 = int_to_ptr.vmem [resolvable:$true] %s21
      %24 = dma.hbm_to_vmem [thread:$0]  %s20, 128, %s22, [#allocation3]
    $region5: #{tpu_custom_call.1} parent=1 // pred_fallthru
      _
    // Predicated region
    $region6: #{tpu_custom_call.1} parent=1 // pred_check
      _
    $region7: #{tpu_custom_call.1} parent=1 // pred_check_branch
      %26 = sbr.rel (0) target = $region9
    $region8: #{tpu_custom_call.1} parent=1 // pred_region
      %28 = vsyncadd [#allocation6], 0
      %s30 = sshll.u32 %s1, 4
      %s31 = int_to_ptr.hbm [resolvable:$true] %s30
      %s32 = sshll.u32 [#allocation5], 4
      %s33 = int_to_ptr.vmem [resolvable:$true] %s32
      %35 = dma.hbm_to_vmem [thread:$0]  %s31, 256, %s33, [#allocation6]
    $region9: #{tpu_custom_call.1} parent=1 // pred_fallthru
      _
    // Predicated region
    $region10: #{tpu_custom_call.1} parent=1 // pred_check
      _
    $region11: #{tpu_custom_call.1} parent=1 // pred_check_branch
      %37 = sbr.rel (0) target = $region13
    $region12: #{tpu_custom_call.1} parent=1 // pred_region
      %39 = vsyncadd [#allocation6], 0
      %s40 = sshll.u32 %s2, 4
      %s41 = int_to_ptr.hbm [resolvable:$true] %s40
      %s42 = sshll.u32 [#allocation7], 4
      %s43 = int_to_ptr.vmem [resolvable:$true] %s42
      %48 = dma.hbm_to_vmem [thread:$0]  %s41, 12288, %s43, [#allocation6], 192, 192, 12
    $region13: #{tpu_custom_call.1} parent=1 // pred_fallthru
      _
    // Predicated region
    $region14: #{tpu_custom_call.1} parent=1 // pred_check
      _
    $region15: #{tpu_custom_call.1} parent=1 // pred_check_branch
      %50 = sbr.rel (0) target = $region17
    $region16: #{tpu_custom_call.1} parent=1 // pred_region
      %52 = vsyncadd [#allocation9], 0
      %s53 = sshll.u32 %s3, 4
      %s54 = int_to_ptr.hbm [resolvable:$true] %s53
      %s55 = sshll.u32 [#allocation8], 4
      %s56 = int_to_ptr.vmem [resolvable:$true] %s55
      %61 = dma.hbm_to_vmem [thread:$0]  %s54, 3072, %s56, [#allocation9], 64, 64, 4
    $region17: #{tpu_custom_call.1} parent=1 // pred_fallthru
      _
    // Predicated region
    $region18: #{tpu_custom_call.1} parent=1 // pred_check
      _
    $region19: #{tpu_custom_call.1} parent=1 // pred_check_branch
      %63 = sbr.rel (0) target = $region21
    $region20: #{tpu_custom_call.1} parent=1 // pred_region
      %65 = vsyncadd [#allocation9], 0
      %s67 = sshll.u32 %s4, 4
      %s68 = int_to_ptr.hbm [resolvable:$true] %s67
      %s69 = sshll.u32 [#allocation10], 4
      %s70 = int_to_ptr.vmem [resolvable:$true] %s69
      %72 = dma.hbm_to_vmem [thread:$0]  %s68, 256, %s70, [#allocation9]
    $region21: #{tpu_custom_call.1} parent=1 // pred_fallthru
      _
    // Predicated region
    $region22: #{tpu_custom_call.1} parent=1 // pred_check
      _
    $region23: #{tpu_custom_call.1} parent=1 // pred_check_branch
      %74 = sbr.rel (0) target = $region25
    $region24: #{tpu_custom_call.1} parent=1 // pred_region
      %76 = dma.done [#allocation3], 128
    $region25: #{tpu_custom_call.1} parent=1 // pred_fallthru
      _
    // Predicated region
    $region26: #{tpu_custom_call.1} parent=1 // pred_check
      _
    $region27: #{tpu_custom_call.1} parent=1 // pred_check_branch
      %78 = sbr.rel (0) target = $region29
    $region28: #{tpu_custom_call.1} parent=1 // pred_region
      %80 = dma.done [#allocation6], 256
    $region29: #{tpu_custom_call.1} parent=1 // pred_fallthru
      _
    // Predicated region
    $region30: #{tpu_custom_call.1} parent=1 // pred_check
      _
    $region31: #{tpu_custom_call.1} parent=1 // pred_check_branch
      %82 = sbr.rel (0) target = $region33
    $region32: #{tpu_custom_call.1} parent=1 // pred_region
      %84 = dma.done [#allocation6], 12288
    $region33: #{tpu_custom_call.1} parent=1 // pred_fallthru
      _
    // Predicated region
    $region34: #{tpu_custom_call.1} parent=1 // pred_check
      _
    $region35: #{tpu_custom_call.1} parent=1 // pred_check_branch
      %86 = sbr.rel (0) target = $region37
    $region36: #{tpu_custom_call.1} parent=1 // pred_region
      %88 = dma.done [#allocation9], 3072
    $region37: #{tpu_custom_call.1} parent=1 // pred_fallthru
      _
    // Predicated region
    $region38: #{tpu_custom_call.1} parent=1 // pred_check
      _
    $region39: #{tpu_custom_call.1} parent=1 // pred_check_branch
      %90 = sbr.rel (0) target = $region41
    $region40: #{tpu_custom_call.1} parent=1 // pred_region
      %92 = dma.done [#allocation9], 256
    $region41: #{tpu_custom_call.1} parent=1 // pred_fallthru
      _
    %v94 = vld [vmem:[#allocation2] sm:$0xff]
    %v95 = vpack.c.bf16 %v94, %v94
    %v96 = vld [vmem:[#allocation10] sm:$0x77]
    %v97 = vld [vmem:[#allocation10 + $0x8] sm:$0x77]
    %v98 = vld [vmem:[#allocation5] sm:$0xff]
    %v99 = vld [vmem:[#allocation5 + $0x8] sm:$0xff]
    %v102 = vperm.slane %v96, 0
    %v103 = vperm.slane %v96, 4
    %v104 = vperm.slane %v97, 0
    %v105 = vperm.slane %v97, 4
    %v110 = vperm.slane %v102, 0
    %v111 = vperm.slane %v103, 0
    %v112 = vperm.slane %v104, 0
    %v113 = vperm.slane %v105, 0
    %v116 = vunpack.c.l.b16 %v98
    %v117 = vunpack.c.h.b16 %v98
    %v118 = vunpack.c.l.b16 %v99
    %v119 = vunpack.c.h.b16 %v99
    %v120 = vpack.c.b16 %v116, %v116
    %v121 = vpack.c.b16 %v117, %v117
    %v122 = vpack.c.b16 %v118, %v118
    %v123 = vpack.c.b16 %v119, %v119
    %vm124 = vcmask 64512
    %v126 = vsel %vm124, %v95, 0
    %vm128 = vcmask 1043456
    %v130 = vsel %vm128, %v120, 0
    %v133 = vsel %vm128, %v121, 0
    %v136 = vsel %vm128, %v122, 0
    %v139 = vsel %vm128, %v123, 0
    %141 = vmatpush.bf16.msra.mxu0 0
    %142 = vmatpush.bf16.msra.mxu0 0
    %143 = vmatpush.bf16.msra.mxu0 0
    %144 = vmatpush.bf16.msra.mxu0 0
    %145 = vmatpush.bf16.msra.mxu0 0
    %146 = vmatpush.bf16.msra.mxu0 0
    %147 = vmatpush.bf16.msra.mxu0 0
    %148 = vmatpush.bf16.msra.mxu0 %v130
    %149 = vmatmul.bf16.gmra.mxu0 %v126
    %v150 = vpop.f32.mrf.mxu0
    %v151 = vadd.f32 %v110, %v150
    %v152 = vpop.f32.mrf.mxu0
    %153 = vdwg.mxu0
    %154 = vmatpush.bf16.msra.mxu0 0
    %155 = vmatpush.bf16.msra.mxu0 0
    %156 = vmatpush.bf16.msra.mxu0 0
    %157 = vmatpush.bf16.msra.mxu0 0
    %158 = vmatpush.bf16.msra.mxu0 0
    %159 = vmatpush.bf16.msra.mxu0 0
    %160 = vmatpush.bf16.msra.mxu0 0
    %161 = vmatpush.bf16.msra.mxu0 %v133
    %162 = vmatmul.bf16.gmra.mxu0 %v126
    %v163 = vpop.f32.mrf.mxu0
    %v164 = vadd.f32 %v111, %v163
    %v165 = vpop.f32.mrf.mxu0
    %166 = vdwg.mxu0
    %167 = vmatpush.bf16.msra.mxu0 0
    %168 = vmatpush.bf16.msra.mxu0 0
    %169 = vmatpush.bf16.msra.mxu0 0
    %170 = vmatpush.bf16.msra.mxu0 0
    %171 = vmatpush.bf16.msra.mxu0 0
    %172 = vmatpush.bf16.msra.mxu0 0
    %173 = vmatpush.bf16.msra.mxu0 0
    %174 = vmatpush.bf16.msra.mxu0 %v136
    %175 = vmatmul.bf16.gmra.mxu0 %v126
    %v176 = vpop.f32.mrf.mxu0
    %v177 = vadd.f32 %v112, %v176
    %v178 = vpop.f32.mrf.mxu0
    %179 = vdwg.mxu0
    %180 = vmatpush.bf16.msra.mxu0 0
    %181 = vmatpush.bf16.msra.mxu0 0
    %182 = vmatpush.bf16.msra.mxu0 0
    %183 = vmatpush.bf16.msra.mxu0 0
    %184 = vmatpush.bf16.msra.mxu0 0
    %185 = vmatpush.bf16.msra.mxu0 0
    %186 = vmatpush.bf16.msra.mxu0 0
    %187 = vmatpush.bf16.msra.mxu0 %v139
    %188 = vmatmul.bf16.gmra.mxu0 %v126
    %v189 = vpop.f32.mrf.mxu0
    %v190 = vadd.f32 %v113, %v189
    %v191 = vpop.f32.mrf.mxu0
    %192 = vdwg.mxu0
    %v193 = vmax.f32 %v151, 0.0
    %v194 = vmax.f32 %v164, 0.0
    %v195 = vmax.f32 %v177, 0.0
    %v196 = vmax.f32 %v190, 0.0
    %v197 = vpack.c.bf16 %v193, %v193
    %v198 = vpack.c.bf16 %v194, %v194
    %v199 = vpack.c.bf16 %v195, %v195
    %v200 = vpack.c.bf16 %v196, %v196
    %v201 = vld [vmem:[#allocation7] sm:$0xff]
    %v202 = vld [vmem:[#allocation7 + $0x8] sm:$0xf]
    %v203 = vld [vmem:[#allocation7 + $0xc] sm:$0xff]
    %v204 = vld [vmem:[#allocation7 + $0x14] sm:$0xf]
    %v205 = vld [vmem:[#allocation7 + $0x18] sm:$0xff]
    %v206 = vld [vmem:[#allocation7 + $0x20] sm:$0xf]
    %v207 = vld [vmem:[#allocation7 + $0x24] sm:$0xff]
    %v208 = vld [vmem:[#allocation7 + $0x2c] sm:$0xf]
    %v209 = vld [vmem:[#allocation7 + $0x30] sm:$0xff]
    %v210 = vld [vmem:[#allocation7 + $0x38] sm:$0xf]
    %v211 = vld [vmem:[#allocation7 + $0x3c] sm:$0xff]
    %v212 = vld [vmem:[#allocation7 + $0x44] sm:$0xf]
    %v213 = vld [vmem:[#allocation7 + $0x48] sm:$0xff]
    %v214 = vld [vmem:[#allocation7 + $0x50] sm:$0xf]
    %v215 = vld [vmem:[#allocation7 + $0x54] sm:$0xff]
    %v216 = vld [vmem:[#allocation7 + $0x5c] sm:$0xf]
    %v217 = vld [vmem:[#allocation7 + $0x60] sm:$0xff]
    %v218 = vld [vmem:[#allocation7 + $0x68] sm:$0xf]
    %v219 = vld [vmem:[#allocation7 + $0x6c] sm:$0xff]
    %v220 = vld [vmem:[#allocation7 + $0x74] sm:$0xf]
    %v221 = vld [vmem:[#allocation7 + $0x78] sm:$0xff]
    %v222 = vld [vmem:[#allocation7 + $0x80] sm:$0xf]
    %v223 = vld [vmem:[#allocation7 + $0x84] sm:$0xff]
    %v224 = vld [vmem:[#allocation7 + $0x8c] sm:$0xf]
    %v225 = vld [vmem:[#allocation7 + $0x90] sm:$0xff]
    %v226 = vld [vmem:[#allocation7 + $0x98] sm:$0xf]
    %v227 = vld [vmem:[#allocation7 + $0x9c] sm:$0xff]
    %v228 = vld [vmem:[#allocation7 + $0xa4] sm:$0xf]
    %v229 = vld [vmem:[#allocation7 + $0xa8] sm:$0xff]
    %v230 = vld [vmem:[#allocation7 + $0xb0] sm:$0xf]
    %v231 = vld [vmem:[#allocation7 + $0xb4] sm:$0xff]
    %v232 = vld [vmem:[#allocation7 + $0xbc] sm:$0xf]
    %v233 = vld [vmem:[#allocation7 + $0xc0] sm:$0xff]
    %v234 = vld [vmem:[#allocation7 + $0xc8] sm:$0xf]
    %v235 = vld [vmem:[#allocation7 + $0xcc] sm:$0xff]
    %v236 = vld [vmem:[#allocation7 + $0xd4] sm:$0xf]
    %v237 = vld [vmem:[#allocation7 + $0xd8] sm:$0xff]
    %v238 = vld [vmem:[#allocation7 + $0xe0] sm:$0xf]
    %v239 = vld [vmem:[#allocation7 + $0xe4] sm:$0xff]
    %v240 = vld [vmem:[#allocation7 + $0xec] sm:$0xf]
    %v241 = vld [vmem:[#allocation7 + $0xf0] sm:$0xff]
    %v242 = vld [vmem:[#allocation7 + $0xf8] sm:$0xf]
    %v243 = vld [vmem:[#allocation7 + $0xfc] sm:$0xff]
    %v244 = vld [vmem:[#allocation7 + $0x104] sm:$0xf]
    %v245 = vld [vmem:[#allocation7 + $0x108] sm:$0xff]
    %v246 = vld [vmem:[#allocation7 + $0x110] sm:$0xf]
    %v247 = vld [vmem:[#allocation7 + $0x114] sm:$0xff]
    %v248 = vld [vmem:[#allocation7 + $0x11c] sm:$0xf]
    %v249 = vld [vmem:[#allocation7 + $0x120] sm:$0xff]
    %v250 = vld [vmem:[#allocation7 + $0x128] sm:$0xf]
    %v251 = vld [vmem:[#allocation7 + $0x12c] sm:$0xff]
    %v252 = vld [vmem:[#allocation7 + $0x134] sm:$0xf]
    %v253 = vld [vmem:[#allocation7 + $0x138] sm:$0xff]
    %v254 = vld [vmem:[#allocation7 + $0x140] sm:$0xf]
    %v255 = vld [vmem:[#allocation7 + $0x144] sm:$0xff]
    %v256 = vld [vmem:[#allocation7 + $0x14c] sm:$0xf]
    %v257 = vld [vmem:[#allocation7 + $0x150] sm:$0xff]
    %v258 = vld [vmem:[#allocation7 + $0x158] sm:$0xf]
    %v259 = vld [vmem:[#allocation7 + $0x15c] sm:$0xff]
    %v260 = vld [vmem:[#allocation7 + $0x164] sm:$0xf]
    %v261 = vld [vmem:[#allocation7 + $0x168] sm:$0xff]
    %v262 = vld [vmem:[#allocation7 + $0x170] sm:$0xf]
    %v263 = vld [vmem:[#allocation7 + $0x174] sm:$0xff]
    %v264 = vld [vmem:[#allocation7 + $0x17c] sm:$0xf]
    %v265 = vld [vmem:[#allocation7 + $0x180] sm:$0xff]
    %v266 = vld [vmem:[#allocation7 + $0x188] sm:$0xf]
    %v267 = vld [vmem:[#allocation7 + $0x18c] sm:$0xff]
    %v268 = vld [vmem:[#allocation7 + $0x194] sm:$0xf]
    %v269 = vld [vmem:[#allocation7 + $0x198] sm:$0xff]
    %v270 = vld [vmem:[#allocation7 + $0x1a0] sm:$0xf]
    %v271 = vld [vmem:[#allocation7 + $0x1a4] sm:$0xff]
    %v272 = vld [vmem:[#allocation7 + $0x1ac] sm:$0xf]
    %v273 = vld [vmem:[#allocation7 + $0x1b0] sm:$0xff]
    %v274 = vld [vmem:[#allocation7 + $0x1b8] sm:$0xf]
    %v275 = vld [vmem:[#allocation7 + $0x1bc] sm:$0xff]
    %v276 = vld [vmem:[#allocation7 + $0x1c4] sm:$0xf]
    %v277 = vld [vmem:[#allocation7 + $0x1c8] sm:$0xff]
    %v278 = vld [vmem:[#allocation7 + $0x1d0] sm:$0xf]
    %v279 = vld [vmem:[#allocation7 + $0x1d4] sm:$0xff]
    %v280 = vld [vmem:[#allocation7 + $0x1dc] sm:$0xf]
    %v281 = vld [vmem:[#allocation7 + $0x1e0] sm:$0xff]
    %v282 = vld [vmem:[#allocation7 + $0x1e8] sm:$0xf]
    %v283 = vld [vmem:[#allocation7 + $0x1ec] sm:$0xff]
    %v284 = vld [vmem:[#allocation7 + $0x1f4] sm:$0xf]
    %v285 = vld [vmem:[#allocation7 + $0x1f8] sm:$0xff]
    %v286 = vld [vmem:[#allocation7 + $0x200] sm:$0xf]
    %v287 = vld [vmem:[#allocation7 + $0x204] sm:$0xff]
    %v288 = vld [vmem:[#allocation7 + $0x20c] sm:$0xf]
    %v289 = vld [vmem:[#allocation7 + $0x210] sm:$0xff]
    %v290 = vld [vmem:[#allocation7 + $0x218] sm:$0xf]
    %v291 = vld [vmem:[#allocation7 + $0x21c] sm:$0xff]
    %v292 = vld [vmem:[#allocation7 + $0x224] sm:$0xf]
    %v293 = vld [vmem:[#allocation7 + $0x228] sm:$0xff]
    %v294 = vld [vmem:[#allocation7 + $0x230] sm:$0xf]
    %v295 = vld [vmem:[#allocation7 + $0x234] sm:$0xff]
    %v296 = vld [vmem:[#allocation7 + $0x23c] sm:$0xf]
    %v297 = vld [vmem:[#allocation7 + $0x240] sm:$0xff]
    %v298 = vld [vmem:[#allocation7 + $0x248] sm:$0xf]
    %v299 = vld [vmem:[#allocation7 + $0x24c] sm:$0xff]
    %v300 = vld [vmem:[#allocation7 + $0x254] sm:$0xf]
    %v301 = vld [vmem:[#allocation7 + $0x258] sm:$0xff]
    %v302 = vld [vmem:[#allocation7 + $0x260] sm:$0xf]
    %v303 = vld [vmem:[#allocation7 + $0x264] sm:$0xff]
    %v304 = vld [vmem:[#allocation7 + $0x26c] sm:$0xf]
    %v305 = vld [vmem:[#allocation7 + $0x270] sm:$0xff]
    %v306 = vld [vmem:[#allocation7 + $0x278] sm:$0xf]
    %v307 = vld [vmem:[#allocation7 + $0x27c] sm:$0xff]
    %v308 = vld [vmem:[#allocation7 + $0x284] sm:$0xf]
    %v309 = vld [vmem:[#allocation7 + $0x288] sm:$0xff]
    %v310 = vld [vmem:[#allocation7 + $0x290] sm:$0xf]
    %v311 = vld [vmem:[#allocation7 + $0x294] sm:$0xff]
    %v312 = vld [vmem:[#allocation7 + $0x29c] sm:$0xf]
    %v313 = vld [vmem:[#allocation7 + $0x2a0] sm:$0xff]
    %v314 = vld [vmem:[#allocation7 + $0x2a8] sm:$0xf]
    %v315 = vld [vmem:[#allocation7 + $0x2ac] sm:$0xff]
    %v316 = vld [vmem:[#allocation7 + $0x2b4] sm:$0xf]
    %v317 = vld [vmem:[#allocation7 + $0x2b8] sm:$0xff]
    %v318 = vld [vmem:[#allocation7 + $0x2c0] sm:$0xf]
    %v319 = vld [vmem:[#allocation7 + $0x2c4] sm:$0xff]
    %v320 = vld [vmem:[#allocation7 + $0x2cc] sm:$0xf]
    %v321 = vld [vmem:[#allocation7 + $0x2d0] sm:$0xff]
    %v322 = vld [vmem:[#allocation7 + $0x2d8] sm:$0xf]
    %v323 = vld [vmem:[#allocation7 + $0x2dc] sm:$0xff]
    %v324 = vld [vmem:[#allocation7 + $0x2e4] sm:$0xf]
    %v325 = vld [vmem:[#allocation7 + $0x2e8] sm:$0xff]
    %v326 = vld [vmem:[#allocation7 + $0x2f0] sm:$0xf]
    %v327 = vld [vmem:[#allocation7 + $0x2f4] sm:$0xff]
    %v328 = vld [vmem:[#allocation7 + $0x2fc] sm:$0xf]
    %v329 = vperm.slane %v96, 1
    %v330 = vperm.slane %v96, 5
    %v331 = vperm.slane %v97, 1
    %v335 = vperm.slane %v329, 1
    %v336 = vperm.slane %v330, 1
    %v337 = vperm.slane %v331, 1
    %v466 = vunpack.c.l.b16 %v201
    %v467 = vunpack.c.h.b16 %v201
    %v468 = vunpack.c.l.b16 %v202
    %v469 = vunpack.c.l.b16 %v203
    %v470 = vunpack.c.h.b16 %v203
    %v471 = vunpack.c.l.b16 %v204
    %v472 = vunpack.c.l.b16 %v205
    %v473 = vunpack.c.h.b16 %v205
    %v474 = vunpack.c.l.b16 %v206
    %v475 = vunpack.c.l.b16 %v207
    %v476 = vunpack.c.h.b16 %v207
    %v477 = vunpack.c.l.b16 %v208
    %v478 = vunpack.c.l.b16 %v209
    %v479 = vunpack.c.h.b16 %v209
    %v480 = vunpack.c.l.b16 %v210
    %v481 = vunpack.c.l.b16 %v211
    %v482 = vunpack.c.h.b16 %v211
    %v483 = vunpack.c.l.b16 %v212
    %v484 = vunpack.c.l.b16 %v213
    %v485 = vunpack.c.h.b16 %v213
    %v486 = vunpack.c.l.b16 %v214
    %v487 = vunpack.c.l.b16 %v215
    %v488 = vunpack.c.h.b16 %v215
    %v489 = vunpack.c.l.b16 %v216
    %v490 = vunpack.c.l.b16 %v217
    %v491 = vunpack.c.h.b16 %v217
    %v492 = vunpack.c.l.b16 %v218
    %v493 = vunpack.c.l.b16 %v219
    %v494 = vunpack.c.h.b16 %v219
    %v495 = vunpack.c.l.b16 %v220
    %v496 = vunpack.c.l.b16 %v221
    %v497 = vunpack.c.h.b16 %v221
    %v498 = vunpack.c.l.b16 %v222
    %v499 = vunpack.c.l.b16 %v223
    %v500 = vunpack.c.h.b16 %v223
    %v501 = vunpack.c.l.b16 %v224
    %v502 = vunpack.c.l.b16 %v225
    %v503 = vunpack.c.h.b16 %v225
    %v504 = vunpack.c.l.b16 %v226
    %v505 = vunpack.c.l.b16 %v227
    %v506 = vunpack.c.h.b16 %v227
    %v507 = vunpack.c.l.b16 %v228
    %v508 = vunpack.c.l.b16 %v229
    %v509 = vunpack.c.h.b16 %v229
    %v510 = vunpack.c.l.b16 %v230
    %v511 = vunpack.c.l.b16 %v231
    %v512 = vunpack.c.h.b16 %v231
    %v513 = vunpack.c.l.b16 %v232
    %v514 = vunpack.c.l.b16 %v233
    %v515 = vunpack.c.h.b16 %v233
    %v516 = vunpack.c.l.b16 %v234
    %v517 = vunpack.c.l.b16 %v235
    %v518 = vunpack.c.h.b16 %v235
    %v519 = vunpack.c.l.b16 %v236
    %v520 = vunpack.c.l.b16 %v237
    %v521 = vunpack.c.h.b16 %v237
    %v522 = vunpack.c.l.b16 %v238
    %v523 = vunpack.c.l.b16 %v239
    %v524 = vunpack.c.h.b16 %v239
    %v525 = vunpack.c.l.b16 %v240
    %v526 = vunpack.c.l.b16 %v241
    %v527 = vunpack.c.h.b16 %v241
    %v528 = vunpack.c.l.b16 %v242
    %v529 = vunpack.c.l.b16 %v243
    %v530 = vunpack.c.h.b16 %v243
    %v531 = vunpack.c.l.b16 %v244
    %v532 = vunpack.c.l.b16 %v245
    %v533 = vunpack.c.h.b16 %v245
    %v534 = vunpack.c.l.b16 %v246
    %v535 = vunpack.c.l.b16 %v247
    %v536 = vunpack.c.h.b16 %v247
    %v537 = vunpack.c.l.b16 %v248
    %v538 = vunpack.c.l.b16 %v249
    %v539 = vunpack.c.h.b16 %v249
    %v540 = vunpack.c.l.b16 %v250
    %v541 = vunpack.c.l.b16 %v251
    %v542 = vunpack.c.h.b16 %v251
    %v543 = vunpack.c.l.b16 %v252
    %v544 = vunpack.c.l.b16 %v253
    %v545 = vunpack.c.h.b16 %v253
    %v546 = vunpack.c.l.b16 %v254
    %v547 = vunpack.c.l.b16 %v255
    %v548 = vunpack.c.h.b16 %v255
    %v549 = vunpack.c.l.b16 %v256
    %v550 = vunpack.c.l.b16 %v257
    %v551 = vunpack.c.h.b16 %v257
    %v552 = vunpack.c.l.b16 %v258
    %v553 = vunpack.c.l.b16 %v259
    %v554 = vunpack.c.h.b16 %v259
    %v555 = vunpack.c.l.b16 %v260
    %v556 = vunpack.c.l.b16 %v261
    %v557 = vunpack.c.h.b16 %v261
    %v558 = vunpack.c.l.b16 %v262
    %v559 = vunpack.c.l.b16 %v263
    %v560 = vunpack.c.h.b16 %v263
    %v561 = vunpack.c.l.b16 %v264
    %v562 = vunpack.c.l.b16 %v265
    %v563 = vunpack.c.h.b16 %v265
    %v564 = vunpack.c.l.b16 %v266
    %v565 = vunpack.c.l.b16 %v267
    %v566 = vunpack.c.h.b16 %v267
    %v567 = vunpack.c.l.b16 %v268
    %v568 = vunpack.c.l.b16 %v269
    %v569 = vunpack.c.h.b16 %v269
    %v570 = vunpack.c.l.b16 %v270
    %v571 = vunpack.c.l.b16 %v271
    %v572 = vunpack.c.h.b16 %v271
    %v573 = vunpack.c.l.b16 %v272
    %v574 = vunpack.c.l.b16 %v273
    %v575 = vunpack.c.h.b16 %v273
    %v576 = vunpack.c.l.b16 %v274
    %v577 = vunpack.c.l.b16 %v275
    %v578 = vunpack.c.h.b16 %v275
    %v579 = vunpack.c.l.b16 %v276
    %v580 = vunpack.c.l.b16 %v277
    %v581 = vunpack.c.h.b16 %v277
    %v582 = vunpack.c.l.b16 %v278
    %v583 = vunpack.c.l.b16 %v279
    %v584 = vunpack.c.h.b16 %v279
    %v585 = vunpack.c.l.b16 %v280
    %v586 = vunpack.c.l.b16 %v281
    %v587 = vunpack.c.h.b16 %v281
    %v588 = vunpack.c.l.b16 %v282
    %v589 = vunpack.c.l.b16 %v283
    %v590 = vunpack.c.h.b16 %v283
    %v591 = vunpack.c.l.b16 %v284
    %v592 = vunpack.c.l.b16 %v285
    %v593 = vunpack.c.h.b16 %v285
    %v594 = vunpack.c.l.b16 %v286
    %v595 = vunpack.c.l.b16 %v287
    %v596 = vunpack.c.h.b16 %v287
    %v597 = vunpack.c.l.b16 %v288
    %v598 = vunpack.c.l.b16 %v289
    %v599 = vunpack.c.h.b16 %v289
    %v600 = vunpack.c.l.b16 %v290
    %v601 = vunpack.c.l.b16 %v291
    %v602 = vunpack.c.h.b16 %v291
    %v603 = vunpack.c.l.b16 %v292
    %v604 = vunpack.c.l.b16 %v293
    %v605 = vunpack.c.h.b16 %v293
    %v606 = vunpack.c.l.b16 %v294
    %v607 = vunpack.c.l.b16 %v295
    %v608 = vunpack.c.h.b16 %v295
    %v609 = vunpack.c.l.b16 %v296
    %v610 = vunpack.c.l.b16 %v297
    %v611 = vunpack.c.h.b16 %v297
    %v612 = vunpack.c.l.b16 %v298
    %v613 = vunpack.c.l.b16 %v299
    %v614 = vunpack.c.h.b16 %v299
    %v615 = vunpack.c.l.b16 %v300
    %v616 = vunpack.c.l.b16 %v301
    %v617 = vunpack.c.h.b16 %v301
    %v618 = vunpack.c.l.b16 %v302
    %v619 = vunpack.c.l.b16 %v303
    %v620 = vunpack.c.h.b16 %v303
    %v621 = vunpack.c.l.b16 %v304
    %v622 = vunpack.c.l.b16 %v305
    %v623 = vunpack.c.h.b16 %v305
    %v624 = vunpack.c.l.b16 %v306
    %v625 = vunpack.c.l.b16 %v307
    %v626 = vunpack.c.h.b16 %v307
    %v627 = vunpack.c.l.b16 %v308
    %v628 = vunpack.c.l.b16 %v309
    %v629 = vunpack.c.h.b16 %v309
    %v630 = vunpack.c.l.b16 %v310
    %v631 = vunpack.c.l.b16 %v311
    %v632 = vunpack.c.h.b16 %v311
    %v633 = vunpack.c.l.b16 %v312
    %v634 = vunpack.c.l.b16 %v313
    %v635 = vunpack.c.h.b16 %v313
    %v636 = vunpack.c.l.b16 %v314
    %v637 = vunpack.c.l.b16 %v315
    %v638 = vunpack.c.h.b16 %v315
    %v639 = vunpack.c.l.b16 %v316
    %v640 = vunpack.c.l.b16 %v317
    %v641 = vunpack.c.h.b16 %v317
    %v642 = vunpack.c.l.b16 %v318
    %v643 = vunpack.c.l.b16 %v319
    %v644 = vunpack.c.h.b16 %v319
    %v645 = vunpack.c.l.b16 %v320
    %v646 = vunpack.c.l.b16 %v321
    %v647 = vunpack.c.h.b16 %v321
    %v648 = vunpack.c.l.b16 %v322
    %v649 = vunpack.c.l.b16 %v323
    %v650 = vunpack.c.h.b16 %v323
    %v651 = vunpack.c.l.b16 %v324
    %v652 = vunpack.c.l.b16 %v325
    %v653 = vunpack.c.h.b16 %v325
    %v654 = vunpack.c.l.b16 %v326
    %v655 = vunpack.c.l.b16 %v327
    %v656 = vunpack.c.h.b16 %v327
    %v657 = vunpack.c.l.b16 %v328
    %v658 = vpack.c.b16 %v469, %v466
    %v659 = vpack.c.b16 %v470, %v467
    %v660 = vpack.c.b16 %v471, %v468
    %v661 = vpack.c.b16 %v475, %v472
    %v662 = vpack.c.b16 %v476, %v473
    %v663 = vpack.c.b16 %v477, %v474
    %v664 = vpack.c.b16 %v481, %v478
    %v665 = vpack.c.b16 %v482, %v479
    %v666 = vpack.c.b16 %v483, %v480
    %v667 = vpack.c.b16 %v487, %v484
    %v668 = vpack.c.b16 %v488, %v485
    %v669 = vpack.c.b16 %v489, %v486
    %v670 = vpack.c.b16 %v493, %v490
    %v671 = vpack.c.b16 %v494, %v491
    %v672 = vpack.c.b16 %v495, %v492
    %v673 = vpack.c.b16 %v499, %v496
    %v674 = vpack.c.b16 %v500, %v497
    %v675 = vpack.c.b16 %v501, %v498
    %v676 = vpack.c.b16 %v505, %v502
    %v677 = vpack.c.b16 %v506, %v503
    %v678 = vpack.c.b16 %v507, %v504
    %v679 = vpack.c.b16 %v511, %v508
    %v680 = vpack.c.b16 %v512, %v509
    %v681 = vpack.c.b16 %v513, %v510
    %v682 = vpack.c.b16 %v517, %v514
    %v683 = vpack.c.b16 %v518, %v515
    %v684 = vpack.c.b16 %v519, %v516
    %v685 = vpack.c.b16 %v523, %v520
    %v686 = vpack.c.b16 %v524, %v521
    %v687 = vpack.c.b16 %v525, %v522
    %v688 = vpack.c.b16 %v529, %v526
    %v689 = vpack.c.b16 %v530, %v527
    %v690 = vpack.c.b16 %v531, %v528
    %v691 = vpack.c.b16 %v535, %v532
    %v692 = vpack.c.b16 %v536, %v533
    %v693 = vpack.c.b16 %v537, %v534
    %v694 = vpack.c.b16 %v541, %v538
    %v695 = vpack.c.b16 %v542, %v539
    %v696 = vpack.c.b16 %v543, %v540
    %v697 = vpack.c.b16 %v547, %v544
    %v698 = vpack.c.b16 %v548, %v545
    %v699 = vpack.c.b16 %v549, %v546
    %v700 = vpack.c.b16 %v553, %v550
    %v701 = vpack.c.b16 %v554, %v551
    %v702 = vpack.c.b16 %v555, %v552
    %v703 = vpack.c.b16 %v559, %v556
    %v704 = vpack.c.b16 %v560, %v557
    %v705 = vpack.c.b16 %v561, %v558
    %v706 = vpack.c.b16 %v565, %v562
    %v707 = vpack.c.b16 %v566, %v563
    %v708 = vpack.c.b16 %v567, %v564
    %v709 = vpack.c.b16 %v571, %v568
    %v710 = vpack.c.b16 %v572, %v569
    %v711 = vpack.c.b16 %v573, %v570
    %v712 = vpack.c.b16 %v577, %v574
    %v713 = vpack.c.b16 %v578, %v575
    %v714 = vpack.c.b16 %v579, %v576
    %v715 = vpack.c.b16 %v583, %v580
    %v716 = vpack.c.b16 %v584, %v581
    %v717 = vpack.c.b16 %v585, %v582
    %v718 = vpack.c.b16 %v589, %v586
    %v719 = vpack.c.b16 %v590, %v587
    %v720 = vpack.c.b16 %v591, %v588
    %v721 = vpack.c.b16 %v595, %v592
    %v722 = vpack.c.b16 %v596, %v593
    %v723 = vpack.c.b16 %v597, %v594
    %v724 = vpack.c.b16 %v601, %v598
    %v725 = vpack.c.b16 %v602, %v599
    %v726 = vpack.c.b16 %v603, %v600
    %v727 = vpack.c.b16 %v607, %v604
    %v728 = vpack.c.b16 %v608, %v605
    %v729 = vpack.c.b16 %v609, %v606
    %v730 = vpack.c.b16 %v613, %v610
    %v731 = vpack.c.b16 %v614, %v611
    %v732 = vpack.c.b16 %v615, %v612
    %v733 = vpack.c.b16 %v619, %v616
    %v734 = vpack.c.b16 %v620, %v617
    %v735 = vpack.c.b16 %v621, %v618
    %v736 = vpack.c.b16 %v625, %v622
    %v737 = vpack.c.b16 %v626, %v623
    %v738 = vpack.c.b16 %v627, %v624
    %v739 = vpack.c.b16 %v631, %v628
    %v740 = vpack.c.b16 %v632, %v629
    %v741 = vpack.c.b16 %v633, %v630
    %v742 = vpack.c.b16 %v637, %v634
    %v743 = vpack.c.b16 %v638, %v635
    %v744 = vpack.c.b16 %v639, %v636
    %v745 = vpack.c.b16 %v643, %v640
    %v746 = vpack.c.b16 %v644, %v641
    %v747 = vpack.c.b16 %v645, %v642
    %v748 = vpack.c.b16 %v649, %v646
    %v749 = vpack.c.b16 %v650, %v647
    %v750 = vpack.c.b16 %v651, %v648
    %v751 = vpack.c.b16 %v655, %v652
    %v752 = vpack.c.b16 %v656, %v653
    %v753 = vpack.c.b16 %v657, %v654
    %850 = vmatpush.bf16.msra.mxu0 %v679
    %851 = vmatpush.bf16.msra.mxu0 %v676
    %852 = vmatpush.bf16.msra.mxu0 %v673
    %853 = vmatpush.bf16.msra.mxu0 %v670
    %854 = vmatpush.bf16.msra.mxu0 %v667
    %855 = vmatpush.bf16.msra.mxu0 %v664
    %856 = vmatpush.bf16.msra.mxu0 %v661
    %857 = vmatpush.bf16.msra.mxu0 %v658
    %858 = vmatmul.bf16.gmra.mxu0 %v197
    %v859 = vpop.f32.mrf.mxu0
    %v860 = vadd.f32 %v335, %v859
    %v861 = vpop.f32.mrf.mxu0
    %862 = vdwg.mxu0
    %863 = vmatpush.bf16.msra.mxu0 %v703
    %864 = vmatpush.bf16.msra.mxu0 %v700
    %865 = vmatpush.bf16.msra.mxu0 %v697
    %866 = vmatpush.bf16.msra.mxu0 %v694
    %867 = vmatpush.bf16.msra.mxu0 %v691
    %868 = vmatpush.bf16.msra.mxu0 %v688
    %869 = vmatpush.bf16.msra.mxu0 %v685
    %870 = vmatpush.bf16.msra.mxu0 %v682
    %871 = vmatmul.bf16.gmra.mxu0 %v198
    %v872 = vpop.f32.mrf.mxu0
    %v873 = vadd.f32 %v860, %v872
    %v874 = vpop.f32.mrf.mxu0
    %875 = vdwg.mxu0
    %876 = vmatpush.bf16.msra.mxu0 %v727
    %877 = vmatpush.bf16.msra.mxu0 %v724
    %878 = vmatpush.bf16.msra.mxu0 %v721
    %879 = vmatpush.bf16.msra.mxu0 %v718
    %880 = vmatpush.bf16.msra.mxu0 %v715
    %881 = vmatpush.bf16.msra.mxu0 %v712
    %882 = vmatpush.bf16.msra.mxu0 %v709
    %883 = vmatpush.bf16.msra.mxu0 %v706
    %884 = vmatmul.bf16.gmra.mxu0 %v199
    %v885 = vpop.f32.mrf.mxu0
    %v886 = vadd.f32 %v873, %v885
    %v887 = vpop.f32.mrf.mxu0
    %888 = vdwg.mxu0
    %889 = vmatpush.bf16.msra.mxu0 %v751
    %890 = vmatpush.bf16.msra.mxu0 %v748
    %891 = vmatpush.bf16.msra.mxu0 %v745
    %892 = vmatpush.bf16.msra.mxu0 %v742
    %893 = vmatpush.bf16.msra.mxu0 %v739
    %894 = vmatpush.bf16.msra.mxu0 %v736
    %895 = vmatpush.bf16.msra.mxu0 %v733
    %896 = vmatpush.bf16.msra.mxu0 %v730
    %897 = vmatmul.bf16.gmra.mxu0 %v200
    %v898 = vpop.f32.mrf.mxu0
    %v899 = vadd.f32 %v886, %v898
    %v900 = vpop.f32.mrf.mxu0
    %901 = vdwg.mxu0
    %902 = vmatpush.bf16.msra.mxu0 %v680
    %903 = vmatpush.bf16.msra.mxu0 %v677
    %904 = vmatpush.bf16.msra.mxu0 %v674
    %905 = vmatpush.bf16.msra.mxu0 %v671
    %906 = vmatpush.bf16.msra.mxu0 %v668
    %907 = vmatpush.bf16.msra.mxu0 %v665
    %908 = vmatpush.bf16.msra.mxu0 %v662
    %909 = vmatpush.bf16.msra.mxu0 %v659
    %910 = vmatmul.bf16.gmra.mxu0 %v197
    %v911 = vpop.f32.mrf.mxu0
    %v912 = vadd.f32 %v336, %v911
    %v913 = vpop.f32.mrf.mxu0
    %914 = vdwg.mxu0
    %915 = vmatpush.bf16.msra.mxu0 %v704
    %916 = vmatpush.bf16.msra.mxu0 %v701
    %917 = vmatpush.bf16.msra.mxu0 %v698
    %918 = vmatpush.bf16.msra.mxu0 %v695
    %919 = vmatpush.bf16.msra.mxu0 %v692
    %920 = vmatpush.bf16.msra.mxu0 %v689
    %921 = vmatpush.bf16.msra.mxu0 %v686
    %922 = vmatpush.bf16.msra.mxu0 %v683
    %923 = vmatmul.bf16.gmra.mxu0 %v198
    %v924 = vpop.f32.mrf.mxu0
    %v925 = vadd.f32 %v912, %v924
    %v926 = vpop.f32.mrf.mxu0
    %927 = vdwg.mxu0
    %928 = vmatpush.bf16.msra.mxu0 %v728
    %929 = vmatpush.bf16.msra.mxu0 %v725
    %930 = vmatpush.bf16.msra.mxu0 %v722
    %931 = vmatpush.bf16.msra.mxu0 %v719
    %932 = vmatpush.bf16.msra.mxu0 %v716
    %933 = vmatpush.bf16.msra.mxu0 %v713
    %934 = vmatpush.bf16.msra.mxu0 %v710
    %935 = vmatpush.bf16.msra.mxu0 %v707
    %936 = vmatmul.bf16.gmra.mxu0 %v199
    %v937 = vpop.f32.mrf.mxu0
    %v938 = vadd.f32 %v925, %v937
    %v939 = vpop.f32.mrf.mxu0
    %940 = vdwg.mxu0
    %941 = vmatpush.bf16.msra.mxu0 %v752
    %942 = vmatpush.bf16.msra.mxu0 %v749
    %943 = vmatpush.bf16.msra.mxu0 %v746
    %944 = vmatpush.bf16.msra.mxu0 %v743
    %945 = vmatpush.bf16.msra.mxu0 %v740
    %946 = vmatpush.bf16.msra.mxu0 %v737
    %947 = vmatpush.bf16.msra.mxu0 %v734
    %948 = vmatpush.bf16.msra.mxu0 %v731
    %949 = vmatmul.bf16.gmra.mxu0 %v200
    %v950 = vpop.f32.mrf.mxu0
    %v951 = vadd.f32 %v938, %v950
    %v952 = vpop.f32.mrf.mxu0
    %953 = vdwg.mxu0
    %954 = vmatpush.bf16.msra.mxu0 %v681
    %955 = vmatpush.bf16.msra.mxu0 %v678
    %956 = vmatpush.bf16.msra.mxu0 %v675
    %957 = vmatpush.bf16.msra.mxu0 %v672
    %958 = vmatpush.bf16.msra.mxu0 %v669
    %959 = vmatpush.bf16.msra.mxu0 %v666
    %960 = vmatpush.bf16.msra.mxu0 %v663
    %961 = vmatpush.bf16.msra.mxu0 %v660
    %962 = vmatmul.bf16.gmra.mxu0 %v197
    %v963 = vpop.f32.mrf.mxu0
    %v964 = vadd.f32 %v337, %v963
    %v965 = vpop.f32.mrf.mxu0
    %966 = vdwg.mxu0
    %967 = vmatpush.bf16.msra.mxu0 %v705
    %968 = vmatpush.bf16.msra.mxu0 %v702
    %969 = vmatpush.bf16.msra.mxu0 %v699
    %970 = vmatpush.bf16.msra.mxu0 %v696
    %971 = vmatpush.bf16.msra.mxu0 %v693
    %972 = vmatpush.bf16.msra.mxu0 %v690
    %973 = vmatpush.bf16.msra.mxu0 %v687
    %974 = vmatpush.bf16.msra.mxu0 %v684
    %975 = vmatmul.bf16.gmra.mxu0 %v198
    %v976 = vpop.f32.mrf.mxu0
    %v977 = vadd.f32 %v964, %v976
    %v978 = vpop.f32.mrf.mxu0
    %979 = vdwg.mxu0
    %980 = vmatpush.bf16.msra.mxu0 %v729
    %981 = vmatpush.bf16.msra.mxu0 %v726
    %982 = vmatpush.bf16.msra.mxu0 %v723
    %983 = vmatpush.bf16.msra.mxu0 %v720
    %984 = vmatpush.bf16.msra.mxu0 %v717
    %985 = vmatpush.bf16.msra.mxu0 %v714
    %986 = vmatpush.bf16.msra.mxu0 %v711
    %987 = vmatpush.bf16.msra.mxu0 %v708
    %988 = vmatmul.bf16.gmra.mxu0 %v199
    %v989 = vpop.f32.mrf.mxu0
    %v990 = vadd.f32 %v977, %v989
    %v991 = vpop.f32.mrf.mxu0
    %992 = vdwg.mxu0
    %993 = vmatpush.bf16.msra.mxu0 %v753
    %994 = vmatpush.bf16.msra.mxu0 %v750
    %995 = vmatpush.bf16.msra.mxu0 %v747
    %996 = vmatpush.bf16.msra.mxu0 %v744
    %997 = vmatpush.bf16.msra.mxu0 %v741
    %998 = vmatpush.bf16.msra.mxu0 %v738
    %999 = vmatpush.bf16.msra.mxu0 %v735
    %1000 = vmatpush.bf16.msra.mxu0 %v732
    %1001 = vmatmul.bf16.gmra.mxu0 %v200
    %v1002 = vpop.f32.mrf.mxu0
    %v1003 = vadd.f32 %v990, %v1002
    %v1004 = vpop.f32.mrf.mxu0
    %1005 = vdwg.mxu0
    %v1006 = vmax.f32 %v899, 0.0
    %v1007 = vmax.f32 %v951, 0.0
    %v1008 = vmax.f32 %v1003, 0.0
    %v1009 = vpack.c.bf16 %v1006, %v1006
    %v1010 = vpack.c.bf16 %v1007, %v1007
    %v1011 = vpack.c.bf16 %v1008, %v1008
    %v1012 = vld [vmem:[#allocation8] sm:$0xf]
    %v1013 = vld [vmem:[#allocation8 + $0x4] sm:$0xf]
    %v1014 = vld [vmem:[#allocation8 + $0x8] sm:$0xf]
    %v1015 = vld [vmem:[#allocation8 + $0xc] sm:$0xf]
    %v1016 = vld [vmem:[#allocation8 + $0x10] sm:$0xf]
    %v1017 = vld [vmem:[#allocation8 + $0x14] sm:$0xf]
    %v1018 = vld [vmem:[#allocation8 + $0x18] sm:$0xf]
    %v1019 = vld [vmem:[#allocation8 + $0x1c] sm:$0xf]
    %v1020 = vld [vmem:[#allocation8 + $0x20] sm:$0xf]
    %v1021 = vld [vmem:[#allocation8 + $0x24] sm:$0xf]
    %v1022 = vld [vmem:[#allocation8 + $0x28] sm:$0xf]
    %v1023 = vld [vmem:[#allocation8 + $0x2c] sm:$0xf]
    %v1024 = vld [vmem:[#allocation8 + $0x30] sm:$0xf]
    %v1025 = vld [vmem:[#allocation8 + $0x34] sm:$0xf]
    %v1026 = vld [vmem:[#allocation8 + $0x38] sm:$0xf]
    %v1027 = vld [vmem:[#allocation8 + $0x3c] sm:$0xf]
    %v1028 = vld [vmem:[#allocation8 + $0x40] sm:$0xf]
    %v1029 = vld [vmem:[#allocation8 + $0x44] sm:$0xf]
    %v1030 = vld [vmem:[#allocation8 + $0x48] sm:$0xf]
    %v1031 = vld [vmem:[#allocation8 + $0x4c] sm:$0xf]
    %v1032 = vld [vmem:[#allocation8 + $0x50] sm:$0xf]
    %v1033 = vld [vmem:[#allocation8 + $0x54] sm:$0xf]
    %v1034 = vld [vmem:[#allocation8 + $0x58] sm:$0xf]
    %v1035 = vld [vmem:[#allocation8 + $0x5c] sm:$0xf]
    %v1036 = vld [vmem:[#allocation8 + $0x60] sm:$0xf]
    %v1037 = vld [vmem:[#allocation8 + $0x64] sm:$0xf]
    %v1038 = vld [vmem:[#allocation8 + $0x68] sm:$0xf]
    %v1039 = vld [vmem:[#allocation8 + $0x6c] sm:$0xf]
    %v1040 = vld [vmem:[#allocation8 + $0x70] sm:$0xf]
    %v1041 = vld [vmem:[#allocation8 + $0x74] sm:$0xf]
    %v1042 = vld [vmem:[#allocation8 + $0x78] sm:$0xf]
    %v1043 = vld [vmem:[#allocation8 + $0x7c] sm:$0xf]
    %v1044 = vld [vmem:[#allocation8 + $0x80] sm:$0xf]
    %v1045 = vld [vmem:[#allocation8 + $0x84] sm:$0xf]
    %v1046 = vld [vmem:[#allocation8 + $0x88] sm:$0xf]
    %v1047 = vld [vmem:[#allocation8 + $0x8c] sm:$0xf]
    %v1048 = vld [vmem:[#allocation8 + $0x90] sm:$0xf]
    %v1049 = vld [vmem:[#allocation8 + $0x94] sm:$0xf]
    %v1050 = vld [vmem:[#allocation8 + $0x98] sm:$0xf]
    %v1051 = vld [vmem:[#allocation8 + $0x9c] sm:$0xf]
    %v1052 = vld [vmem:[#allocation8 + $0xa0] sm:$0xf]
    %v1053 = vld [vmem:[#allocation8 + $0xa4] sm:$0xf]
    %v1054 = vld [vmem:[#allocation8 + $0xa8] sm:$0xf]
    %v1055 = vld [vmem:[#allocation8 + $0xac] sm:$0xf]
    %v1056 = vld [vmem:[#allocation8 + $0xb0] sm:$0xf]
    %v1057 = vld [vmem:[#allocation8 + $0xb4] sm:$0xf]
    %v1058 = vld [vmem:[#allocation8 + $0xb8] sm:$0xf]
    %v1059 = vld [vmem:[#allocation8 + $0xbc] sm:$0xf]
    %v1060 = vperm.slane %v96, 2
    %v1109 = vunpack.c.l.b16 %v1012
    %v1110 = vunpack.c.l.b16 %v1013
    %v1111 = vunpack.c.l.b16 %v1014
    %v1112 = vunpack.c.l.b16 %v1015
    %v1113 = vunpack.c.l.b16 %v1016
    %v1114 = vunpack.c.l.b16 %v1017
    %v1115 = vunpack.c.l.b16 %v1018
    %v1116 = vunpack.c.l.b16 %v1019
    %v1117 = vunpack.c.l.b16 %v1020
    %v1118 = vunpack.c.l.b16 %v1021
    %v1119 = vunpack.c.l.b16 %v1022
    %v1120 = vunpack.c.l.b16 %v1023
    %v1121 = vunpack.c.l.b16 %v1024
    %v1122 = vunpack.c.l.b16 %v1025
    %v1123 = vunpack.c.l.b16 %v1026
    %v1124 = vunpack.c.l.b16 %v1027
    %v1125 = vunpack.c.l.b16 %v1028
    %v1126 = vunpack.c.l.b16 %v1029
    %v1127 = vunpack.c.l.b16 %v1030
    %v1128 = vunpack.c.l.b16 %v1031
    %v1129 = vunpack.c.l.b16 %v1032
    %v1130 = vunpack.c.l.b16 %v1033
    %v1131 = vunpack.c.l.b16 %v1034
    %v1132 = vunpack.c.l.b16 %v1035
    %v1133 = vunpack.c.l.b16 %v1036
    %v1134 = vunpack.c.l.b16 %v1037
    %v1135 = vunpack.c.l.b16 %v1038
    %v1136 = vunpack.c.l.b16 %v1039
    %v1137 = vunpack.c.l.b16 %v1040
    %v1138 = vunpack.c.l.b16 %v1041
    %v1139 = vunpack.c.l.b16 %v1042
    %v1140 = vunpack.c.l.b16 %v1043
    %v1141 = vunpack.c.l.b16 %v1044
    %v1142 = vunpack.c.l.b16 %v1045
    %v1143 = vunpack.c.l.b16 %v1046
    %v1144 = vunpack.c.l.b16 %v1047
    %v1145 = vunpack.c.l.b16 %v1048
    %v1146 = vunpack.c.l.b16 %v1049
    %v1147 = vunpack.c.l.b16 %v1050
    %v1148 = vunpack.c.l.b16 %v1051
    %v1149 = vunpack.c.l.b16 %v1052
    %v1150 = vunpack.c.l.b16 %v1053
    %v1151 = vunpack.c.l.b16 %v1054
    %v1152 = vunpack.c.l.b16 %v1055
    %v1153 = vunpack.c.l.b16 %v1056
    %v1154 = vunpack.c.l.b16 %v1057
    %v1155 = vunpack.c.l.b16 %v1058
    %v1156 = vunpack.c.l.b16 %v1059
    %v1157 = vpack.c.b16 %v1110, %v1109
    %v1158 = vpack.c.b16 %v1112, %v1111
    %v1159 = vpack.c.b16 %v1114, %v1113
    %v1160 = vpack.c.b16 %v1116, %v1115
    %v1161 = vpack.c.b16 %v1118, %v1117
    %v1162 = vpack.c.b16 %v1120, %v1119
    %v1163 = vpack.c.b16 %v1122, %v1121
    %v1164 = vpack.c.b16 %v1124, %v1123
    %v1165 = vpack.c.b16 %v1126, %v1125
    %v1166 = vpack.c.b16 %v1128, %v1127
    %v1167 = vpack.c.b16 %v1130, %v1129
    %v1168 = vpack.c.b16 %v1132, %v1131
    %v1169 = vpack.c.b16 %v1134, %v1133
    %v1170 = vpack.c.b16 %v1136, %v1135
    %v1171 = vpack.c.b16 %v1138, %v1137
    %v1172 = vpack.c.b16 %v1140, %v1139
    %v1173 = vpack.c.b16 %v1142, %v1141
    %v1174 = vpack.c.b16 %v1144, %v1143
    %v1175 = vpack.c.b16 %v1146, %v1145
    %v1176 = vpack.c.b16 %v1148, %v1147
    %v1177 = vpack.c.b16 %v1150, %v1149
    %v1178 = vpack.c.b16 %v1152, %v1151
    %v1179 = vpack.c.b16 %v1154, %v1153
    %v1180 = vpack.c.b16 %v1156, %v1155
    %1205 = vmatpush.bf16.msra.mxu0 %v1164
    %1206 = vmatpush.bf16.msra.mxu0 %v1163
    %1207 = vmatpush.bf16.msra.mxu0 %v1162
    %1208 = vmatpush.bf16.msra.mxu0 %v1161
    %1209 = vmatpush.bf16.msra.mxu0 %v1160
    %1210 = vmatpush.bf16.msra.mxu0 %v1159
    %1211 = vmatpush.bf16.msra.mxu0 %v1158
    %1212 = vmatpush.bf16.msra.mxu0 %v1157
    %1213 = vmatmul.bf16.gmra.mxu0 %v1009
    %v1214 = vpop.f32.mrf.mxu0
    %v1215 = vadd.f32 %v1060, %v1214
    %v1216 = vpop.f32.mrf.mxu0
    %1217 = vdwg.mxu0
    %1218 = vmatpush.bf16.msra.mxu0 %v1172
    %1219 = vmatpush.bf16.msra.mxu0 %v1171
    %1220 = vmatpush.bf16.msra.mxu0 %v1170
    %1221 = vmatpush.bf16.msra.mxu0 %v1169
    %1222 = vmatpush.bf16.msra.mxu0 %v1168
    %1223 = vmatpush.bf16.msra.mxu0 %v1167
    %1224 = vmatpush.bf16.msra.mxu0 %v1166
    %1225 = vmatpush.bf16.msra.mxu0 %v1165
    %1226 = vmatmul.bf16.gmra.mxu0 %v1010
    %v1227 = vpop.f32.mrf.mxu0
    %v1228 = vadd.f32 %v1215, %v1227
    %v1229 = vpop.f32.mrf.mxu0
    %1230 = vdwg.mxu0
    %1231 = vmatpush.bf16.msra.mxu0 %v1180
    %1232 = vmatpush.bf16.msra.mxu0 %v1179
    %1233 = vmatpush.bf16.msra.mxu0 %v1178
    %1234 = vmatpush.bf16.msra.mxu0 %v1177
    %1235 = vmatpush.bf16.msra.mxu0 %v1176
    %1236 = vmatpush.bf16.msra.mxu0 %v1175
    %1237 = vmatpush.bf16.msra.mxu0 %v1174
    %1238 = vmatpush.bf16.msra.mxu0 %v1173
    %1239 = vmatmul.bf16.gmra.mxu0 %v1011
    %v1240 = vpop.f32.mrf.mxu0
    %v1241 = vadd.f32 %v1228, %v1240
    %v1242 = vpop.f32.mrf.mxu0
    %1243 = vdwg.mxu0
    %v1244 = vtanh.pop %v1241
    %v1245 = vmul.f32 %v1244, 2.0
    %1246 = vst [vmem:[#allocation11] sm:$0xff] %v1245
    // Predicated region
    $region42: #{tpu_custom_call.1} parent=1 // pred_check
      _
    $region43: #{tpu_custom_call.1} parent=1 // pred_check_branch
      %1248 = sbr.rel (0) target = $region45
    $region44: #{tpu_custom_call.1} parent=1 // pred_region
      %1250 = vsyncadd [#allocation4], 0
      %s1252 = sshll.u32 [#allocation11], 4
      %s1253 = int_to_ptr.vmem [resolvable:$true] %s1252
      %s1254 = sshll.u32 %s5, 4
      %s1255 = int_to_ptr.hbm [resolvable:$true] %s1254
      %1257 = dma.vmem_to_hbm [thread:$0]  %s1253, 128, %s1255, [#allocation4]
    $region45: #{tpu_custom_call.1} parent=1 // pred_fallthru
      _
    // Predicated region
    $region46: #{tpu_custom_call.1} parent=1 // pred_check
      _
    $region47: #{tpu_custom_call.1} parent=1 // pred_check_branch
      %1259 = sbr.rel (0) target = $region49
    $region48: #{tpu_custom_call.1} parent=1 // pred_region
      %1261 = dma.done [#allocation4], 128
    $region49: #{tpu_custom_call.1} parent=1 // pred_fallthru
      _
    %1262 = vsyncpa [#allocation3], 1
    %1263 = vsyncpa [#allocation6], 1
    %1264 = vsyncpa [#allocation9], 1
    %1265 = vsyncpa [#allocation4], 1

</llo_original>
